<compile_context>
chip_gen: v7x
topology: tpu7x:2x2x1
jax: 0.10.0
libtpu: 0.0.40
codegen_flags: <defaults>
</compile_context>

<pallas_src>
import numpy as np
import jax
import jax.numpy as jnp
from jax.experimental import pallas as pl
from jax.experimental.pallas import tpu as pltpu


def _round_up(x, m):
    return ((x + m - 1) // m) * m


def _emb_bag_kernel(idx_ref, wts_ref, table_ref, out_ref, acc_ref):
    # idx_ref  : (TB, L)  int32    padded bag indices for this batch tile
    # wts_ref  : (TB, L)  float32  per-sample weights (0.0 on pad slots)
    # table_ref: (TV, Dp) f32/bf16 vocab chunk of the (padded) embedding table
    # out_ref  : (TB, Dp) float32  weighted-sum embedding per bag
    # acc_ref  : (TB, Dp) float32  VMEM accumulator, persists across vocab axis
    k = pl.program_id(1)

    @pl.when(k == 0)
    def _():
        acc_ref[...] = jnp.zeros_like(acc_ref)

    idx = idx_ref[...]
    wts = wts_ref[...]
    TB, L = idx.shape
    TV = table_ref.shape[0]

    # Global vocab ids covered by this chunk: [k*TV, (k+1)*TV).
    iota_v = jax.lax.broadcasted_iota(jnp.int32, (TB, TV), 1) + k * TV

    # Weighted bag matrix for this vocab chunk.  A select (jnp.where) instead
    # of compare->int-cast->mul roughly halves the VALU work on the
    # O(TB*TV*L) hot loop; accumulating immediately keeps only one (TB, TV)
    # temporary live per unrolled step (L is small and static).
    # Out-of-range indices (incl. negatives) simply never hit -> contribute 0.
    bag = jnp.zeros((TB, TV), jnp.float32)
    for j in range(L):
        bag = bag + jnp.where(idx[:, j:j + 1] == iota_v, wts[:, j:j + 1], 0.0)

    # MXU reduction over this vocab chunk; bf16 inputs when the wrapper stored
    # the table in bf16 (v6e/v7x fast path), f32 accumulation either way.
    acc_ref[...] += jnp.dot(bag.astype(table_ref.dtype), table_ref[...],
                            preferred_element_type=jnp.float32)

    @pl.when(k == pl.num_programs(1) - 1)
    def _():
        out_ref[...] = acc_ref[...].astype(out_ref.dtype)


def embedding_bag_sum(idx_dense, wts_dense, table, *, tb=128, tv=512,
                      mxu_dtype=jnp.float32):
    """Pallas weighted EmbeddingBag (mode='sum') over padded dense bags.

    idx_dense : (B, L) int   bag member indices (pad slots: any valid index)
    wts_dense : (B, L) float per-sample weights, 0.0 on pad slots
    table     : (V, D) float embedding table
    tb        : batch tile (MXU LHS rows per grid step), multiple of 8
    tv        : vocab tile (table reduction chunk per grid step)
    mxu_dtype : dtype the table / bag matrix are fed to the MXU in
                (jnp.bfloat16 recommended on v6e/v7x; accumulation stays f32)
    """
    B, L = idx_dense.shape
    V, D = table.shape

    # Tile sizes: sublane multiples of 8, capped at the padded array extents.
    tb = max(8, min(_round_up(tb, 8), _round_up(B, 8)))
    tv = max(8, min(_round_up(tv, 8), _round_up(V, 8)))
    B_pad = _round_up(B, tb)
    V_pad = _round_up(V, tv)
    D_pad = _round_up(D, 128)          # lane-dense table rows / output stores

    idx_p = jnp.zeros((B_pad, L), jnp.int32).at[:B, :].set(
        idx_dense.astype(jnp.int32))
    wts_p = jnp.zeros((B_pad, L), jnp.float32).at[:B, :].set(
        wts_dense.astype(jnp.float32))
    tab_p = jnp.zeros((V_pad, D_pad), mxu_dtype).at[:V, :D].set(
        table.astype(mxu_dtype))

    grid = (B_pad // tb, V_pad // tv)

    # Explicit VMEM budget: double-buffered idx/wts/table/out tiles +
    # accumulator scratch + slack for the in-kernel (tb, tv) bag matrix.
    it = jnp.dtype(mxu_dtype).itemsize
    est = (2 * 2 * tb * L * 4          # idx + wts tiles, double buffered
           + 2 * tv * D_pad * it       # table chunk, double buffered
           + 2 * tb * D_pad * 4        # output tile, double buffered
           + tb * D_pad * 4            # accumulator scratch
           + 4 * tb * tv * 4)          # bag-matrix temporaries
    vmem_limit = int(min(64 * 1024 * 1024, max(32 * 1024 * 1024, 2 * est)))

    out = pl.pallas_call(
        _emb_bag_kernel,
        out_shape=jax.ShapeDtypeStruct((B_pad, D_pad), jnp.float32),
        grid_spec=pltpu.PrefetchScalarGridSpec(
            num_scalar_prefetch=0,
            grid=grid,
            in_specs=[
                pl.BlockSpec((tb, L), lambda i, k: (i, 0)),      # indices
                pl.BlockSpec((tb, L), lambda i, k: (i, 0)),      # weights
                pl.BlockSpec((tv, D_pad), lambda i, k: (k, 0)),  # table chunk
            ],
            out_specs=pl.BlockSpec((tb, D_pad), lambda i, k: (i, 0)),
            scratch_shapes=[pltpu.VMEM((tb, D_pad), jnp.float32)],
        ),
        compiler_params=pltpu.CompilerParams(
            dimension_semantics=("parallel", "arbitrary"),
            vmem_limit_bytes=vmem_limit),
    )(idx_p, wts_p, tab_p)

    return out[:B, :D]


def csr_to_dense(x_ind, x_ptr, x_wts, batch_size, max_len):
    """Densify F.embedding_bag-style CSR (offsets, no trailing offset) to (B, L)."""
    nnz = x_ind.shape[0]
    idx_dense = np.zeros((batch_size, max_len), dtype=np.int32)
    wts_dense = np.zeros((batch_size, max_len), dtype=np.float32)
    ptr = np.concatenate([np.asarray(x_ptr), [nnz]])
    for b in range(batch_size):
        s, e = int(ptr[b]), int(ptr[b + 1])
        n = e - s
        assert n <= max_len, "bag longer than max_len would be truncated"
        idx_dense[b, :n] = x_ind[s:e]
        wts_dense[b, :n] = x_wts[s:e]
    return jnp.asarray(idx_dense), jnp.asarray(wts_dense)


if __name__ == "__main__":
    # Module config (padding_idx=None -> no offset row).
    num_embeddings, embedding_dim = 64, 32
    batch_size, max_len = 16, 8

    key = jax.random.PRNGKey(0)
    k_w, k_ind, k_wts = jax.random.split(key, 3)

    # kaiming_uniform_ (a=0, fan_in = embedding_dim): bound = sqrt(6 / fan_in)
    bound = float(np.sqrt(6.0 / embedding_dim))
    weight = jax.random.uniform(
        k_w, (num_embeddings, embedding_dim),
        minval=-bound, maxval=bound, dtype=jnp.float32)

    # Deterministic variable-length bags (CSR form, as the torch forward takes).
    lens = 1 + (np.arange(batch_size) * 3) % max_len           # in [1, max_len]
    nnz = int(lens.sum())
    x_ptr = np.concatenate([[0], np.cumsum(lens)[:-1]]).astype(np.int32)
    x_ind = np.asarray(
        jax.random.randint(k_ind, (nnz,), 0, num_embeddings, dtype=jnp.int32))
    x_wts = np.asarray(
        jax.random.uniform(k_wts, (nnz,), dtype=jnp.float32))

    # Glue: CSR -> padded dense bags (pad weight 0 => no contribution).
    idx_dense, wts_dense = csr_to_dense(x_ind, x_ptr, x_wts,
                                        batch_size, max_len)

    # Pure-JAX reference of F.embedding_bag(..., mode='sum', per_sample_weights).
    ref = (wts_dense[..., None] * weight[idx_dense]).sum(axis=1)

    # f32 MXU path (exact one-hot weights, tight tolerance).
    out_f32 = jax.block_until_ready(
        embedding_bag_sum(idx_dense, wts_dense, weight,
                          tb=128, tv=512, mxu_dtype=jnp.float32))
    np.testing.assert_allclose(np.asarray(out_f32), np.asarray(ref),
                               rtol=1e-5, atol=1e-5)

    # bf16 table/bag MXU path (v6e/v7x fast path), looser tolerance.
    out_bf16 = jax.block_until_ready(
        embedding_bag_sum(idx_dense, wts_dense, weight,
                          tb=128, tv=512, mxu_dtype=jnp.bfloat16))
    np.testing.assert_allclose(np.asarray(out_bf16), np.asarray(ref),
                               rtol=6e-2, atol=6e-2)

    assert out_f32.shape == (batch_size, embedding_dim)
    print("KERNEL_OK")
</pallas_src>

<mosaic_0001>
module attributes {stable_mosaic.version = 11 : i64} {
  func.func @_emb_bag_kernel(%arg0: i32, %arg1: i32, %arg2: memref<16x8xi32, #tpu.memory_space<vmem>>, %arg3: memref<16x8xf32, #tpu.memory_space<vmem>>, %arg4: memref<64x128xf32, #tpu.memory_space<vmem>>, %arg5: memref<16x128xf32, #tpu.memory_space<vmem>>, %arg6: memref<16x128xf32, #tpu.memory_space<vmem>>) attributes {dimension_semantics = [#tpu.dimension_semantics<parallel>, #tpu.dimension_semantics<arbitrary>], iteration_bounds = array<i64: 1, 1>, scalar_prefetch = 0 : i64, scratch_operands = 1 : i64, tpu.core_type = #tpu.core_type<tc>, window_params = [{transform_indices = @transform_0, window_bounds = array<i64: 16, 8>}, {transform_indices = @transform_1, window_bounds = array<i64: 16, 8>}, {transform_indices = @transform_2, window_bounds = array<i64: 64, 128>}, {transform_indices = @transform_3, window_bounds = array<i64: 16, 128>}]} {
    %c0_i32 = arith.constant 0 : i32
    %0 = arith.cmpi eq, %arg1, %c0_i32 : i32
    %1 = arith.extui %0 : i1 to i32
    %c0_i32_0 = arith.constant 0 : i32
    %2 = arith.cmpi ne, %1, %c0_i32_0 : i32
    scf.if %2 {
      %cst_21 = arith.constant 0.000000e+00 : f32
      %90 = vector.broadcast %cst_21 : f32 to vector<16x128xf32>
      %c0_22 = arith.constant 0 : index
      %c0_23 = arith.constant 0 : index
      %91 = vector.load %arg6[%c0_22, %c0_23] : memref<16x128xf32, #tpu.memory_space<vmem>>, vector<16x128xf32>
      tpu.vector_store %arg6[%c0_22, %c0_23], %90 {strides = array<i32>} : memref<16x128xf32, #tpu.memory_space<vmem>>, vector<16x128xf32>,
    } else {
    }
    %c0 = arith.constant 0 : index
    %c0_1 = arith.constant 0 : index
    %3 = vector.load %arg2[%c0, %c0_1] : memref<16x8xi32, #tpu.memory_space<vmem>>, vector<16x8xi32>
    %c0_2 = arith.constant 0 : index
    %c0_3 = arith.constant 0 : index
    %4 = vector.load %arg3[%c0_2, %c0_3] : memref<16x8xf32, #tpu.memory_space<vmem>>, vector<16x8xf32>
    %5 = tpu.iota {dimensions = array<i32: 1>} : vector<16x64xi32>
    %c64_i32 = arith.constant 64 : i32
    %6 = arith.muli %arg1, %c64_i32 : i32
    %7 = vector.broadcast %6 : i32 to vector<16x64xi32>
    %8 = arith.addi %5, %7 : vector<16x64xi32>
    %cst = arith.constant 0.000000e+00 : f32
    %9 = vector.broadcast %cst : f32 to vector<16x64xf32>
    %10 = vector.extract_strided_slice %3 {offsets = [0, 0], sizes = [16, 1], strides = [1, 1]} : vector<16x8xi32> to vector<16x1xi32>
    %11 = vector.broadcast %10 : vector<16x1xi32> to vector<16x64xi32>
    %12 = arith.cmpi eq, %11, %8 : vector<16x64xi32>
    %13 = vector.extract_strided_slice %4 {offsets = [0, 0], sizes = [16, 1], strides = [1, 1]} : vector<16x8xf32> to vector<16x1xf32>
    %cst_4 = arith.constant 0.000000e+00 : f32
    %14 = vector.shape_cast %13 : vector<16x1xf32> to vector<16x1xf32>
    %15 = vector.broadcast %14 : vector<16x1xf32> to vector<16x64xf32>
    %16 = vector.broadcast %cst_4 : f32 to vector<16x64xf32>
    %17 = arith.select %12, %15, %16 : vector<16x64xi1>, vector<16x64xf32>
    %18 = arith.addf %9, %17 : vector<16x64xf32>
    %19 = vector.extract_strided_slice %3 {offsets = [0, 1], sizes = [16, 1], strides = [1, 1]} : vector<16x8xi32> to vector<16x1xi32>
    %20 = vector.broadcast %19 : vector<16x1xi32> to vector<16x64xi32>
    %21 = arith.cmpi eq, %20, %8 : vector<16x64xi32>
    %22 = vector.extract_strided_slice %4 {offsets = [0, 1], sizes = [16, 1], strides = [1, 1]} : vector<16x8xf32> to vector<16x1xf32>
    %cst_5 = arith.constant 0.000000e+00 : f32
    %23 = vector.shape_cast %22 : vector<16x1xf32> to vector<16x1xf32>
    %24 = vector.broadcast %23 : vector<16x1xf32> to vector<16x64xf32>
    %25 = vector.broadcast %cst_5 : f32 to vector<16x64xf32>
    %26 = arith.select %21, %24, %25 : vector<16x64xi1>, vector<16x64xf32>
    %27 = arith.addf %18, %26 : vector<16x64xf32>
    %28 = vector.extract_strided_slice %3 {offsets = [0, 2], sizes = [16, 1], strides = [1, 1]} : vector<16x8xi32> to vector<16x1xi32>
    %29 = vector.broadcast %28 : vector<16x1xi32> to vector<16x64xi32>
    %30 = arith.cmpi eq, %29, %8 : vector<16x64xi32>
    %31 = vector.extract_strided_slice %4 {offsets = [0, 2], sizes = [16, 1], strides = [1, 1]} : vector<16x8xf32> to vector<16x1xf32>
    %cst_6 = arith.constant 0.000000e+00 : f32
    %32 = vector.shape_cast %31 : vector<16x1xf32> to vector<16x1xf32>
    %33 = vector.broadcast %32 : vector<16x1xf32> to vector<16x64xf32>
    %34 = vector.broadcast %cst_6 : f32 to vector<16x64xf32>
    %35 = arith.select %30, %33, %34 : vector<16x64xi1>, vector<16x64xf32>
    %36 = arith.addf %27, %35 : vector<16x64xf32>
    %37 = vector.extract_strided_slice %3 {offsets = [0, 3], sizes = [16, 1], strides = [1, 1]} : vector<16x8xi32> to vector<16x1xi32>
    %38 = vector.broadcast %37 : vector<16x1xi32> to vector<16x64xi32>
    %39 = arith.cmpi eq, %38, %8 : vector<16x64xi32>
    %40 = vector.extract_strided_slice %4 {offsets = [0, 3], sizes = [16, 1], strides = [1, 1]} : vector<16x8xf32> to vector<16x1xf32>
    %cst_7 = arith.constant 0.000000e+00 : f32
    %41 = vector.shape_cast %40 : vector<16x1xf32> to vector<16x1xf32>
    %42 = vector.broadcast %41 : vector<16x1xf32> to vector<16x64xf32>
    %43 = vector.broadcast %cst_7 : f32 to vector<16x64xf32>
    %44 = arith.select %39, %42, %43 : vector<16x64xi1>, vector<16x64xf32>
    %45 = arith.addf %36, %44 : vector<16x64xf32>
    %46 = vector.extract_strided_slice %3 {offsets = [0, 4], sizes = [16, 1], strides = [1, 1]} : vector<16x8xi32> to vector<16x1xi32>
    %47 = vector.broadcast %46 : vector<16x1xi32> to vector<16x64xi32>
    %48 = arith.cmpi eq, %47, %8 : vector<16x64xi32>
    %49 = vector.extract_strided_slice %4 {offsets = [0, 4], sizes = [16, 1], strides = [1, 1]} : vector<16x8xf32> to vector<16x1xf32>
    %cst_8 = arith.constant 0.000000e+00 : f32
    %50 = vector.shape_cast %49 : vector<16x1xf32> to vector<16x1xf32>
    %51 = vector.broadcast %50 : vector<16x1xf32> to vector<16x64xf32>
    %52 = vector.broadcast %cst_8 : f32 to vector<16x64xf32>
    %53 = arith.select %48, %51, %52 : vector<16x64xi1>, vector<16x64xf32>
    %54 = arith.addf %45, %53 : vector<16x64xf32>
    %55 = vector.extract_strided_slice %3 {offsets = [0, 5], sizes = [16, 1], strides = [1, 1]} : vector<16x8xi32> to vector<16x1xi32>
    %56 = vector.broadcast %55 : vector<16x1xi32> to vector<16x64xi32>
    %57 = arith.cmpi eq, %56, %8 : vector<16x64xi32>
    %58 = vector.extract_strided_slice %4 {offsets = [0, 5], sizes = [16, 1], strides = [1, 1]} : vector<16x8xf32> to vector<16x1xf32>
    %cst_9 = arith.constant 0.000000e+00 : f32
    %59 = vector.shape_cast %58 : vector<16x1xf32> to vector<16x1xf32>
    %60 = vector.broadcast %59 : vector<16x1xf32> to vector<16x64xf32>
    %61 = vector.broadcast %cst_9 : f32 to vector<16x64xf32>
    %62 = arith.select %57, %60, %61 : vector<16x64xi1>, vector<16x64xf32>
    %63 = arith.addf %54, %62 : vector<16x64xf32>
    %64 = vector.extract_strided_slice %3 {offsets = [0, 6], sizes = [16, 1], strides = [1, 1]} : vector<16x8xi32> to vector<16x1xi32>
    %65 = vector.broadcast %64 : vector<16x1xi32> to vector<16x64xi32>
    %66 = arith.cmpi eq, %65, %8 : vector<16x64xi32>
    %67 = vector.extract_strided_slice %4 {offsets = [0, 6], sizes = [16, 1], strides = [1, 1]} : vector<16x8xf32> to vector<16x1xf32>
    %cst_10 = arith.constant 0.000000e+00 : f32
    %68 = vector.shape_cast %67 : vector<16x1xf32> to vector<16x1xf32>
    %69 = vector.broadcast %68 : vector<16x1xf32> to vector<16x64xf32>
    %70 = vector.broadcast %cst_10 : f32 to vector<16x64xf32>
    %71 = arith.select %66, %69, %70 : vector<16x64xi1>, vector<16x64xf32>
    %72 = arith.addf %63, %71 : vector<16x64xf32>
    %73 = vector.extract_strided_slice %3 {offsets = [0, 7], sizes = [16, 1], strides = [1, 1]} : vector<16x8xi32> to vector<16x1xi32>
    %74 = vector.broadcast %73 : vector<16x1xi32> to vector<16x64xi32>
    %75 = arith.cmpi eq, %74, %8 : vector<16x64xi32>
    %76 = vector.extract_strided_slice %4 {offsets = [0, 7], sizes = [16, 1], strides = [1, 1]} : vector<16x8xf32> to vector<16x1xf32>
    %cst_11 = arith.constant 0.000000e+00 : f32
    %77 = vector.shape_cast %76 : vector<16x1xf32> to vector<16x1xf32>
    %78 = vector.broadcast %77 : vector<16x1xf32> to vector<16x64xf32>
    %79 = vector.broadcast %cst_11 : f32 to vector<16x64xf32>
    %80 = arith.select %75, %78, %79 : vector<16x64xi1>, vector<16x64xf32>
    %81 = arith.addf %72, %80 : vector<16x64xf32>
    %c0_12 = arith.constant 0 : index
    %c0_13 = arith.constant 0 : index
    %82 = vector.load %arg6[%c0_12, %c0_13] : memref<16x128xf32, #tpu.memory_space<vmem>>, vector<16x128xf32>
    %c0_14 = arith.constant 0 : index
    %c0_15 = arith.constant 0 : index
    %83 = vector.load %arg4[%c0_14, %c0_15] : memref<64x128xf32, #tpu.memory_space<vmem>>, vector<64x128xf32>
    %cst_16 = arith.constant dense<0.000000e+00> : vector<16x128xf32>
    %84 = tpu.matmul %81, %83, %cst_16 {dimension_numbers = #tpu.dot_dimension_numbers<[1], [0], [0], [1], [0, 0, 1, 1], [], []>} : vector<16x64xf32>, vector<64x128xf32>, vector<16x128xf32> -> vector<16x128xf32>
    %85 = arith.addf %82, %84 : vector<16x128xf32>
    %c0_17 = arith.constant 0 : index
    %c0_18 = arith.constant 0 : index
    %86 = vector.load %arg6[%c0_17, %c0_18] : memref<16x128xf32, #tpu.memory_space<vmem>>, vector<16x128xf32>
    tpu.vector_store %arg6[%c0_17, %c0_18], %85 {strides = array<i32>} : memref<16x128xf32, #tpu.memory_space<vmem>>, vector<16x128xf32>,
    %c0_i32_19 = arith.constant 0 : i32
    %87 = arith.cmpi eq, %arg1, %c0_i32_19 : i32
    %88 = arith.extui %87 : i1 to i32
    %c0_i32_20 = arith.constant 0 : i32
    %89 = arith.cmpi ne, %88, %c0_i32_20 : i32
    scf.if %89 {
      %c0_21 = arith.constant 0 : index
      %c0_22 = arith.constant 0 : index
      %90 = vector.load %arg6[%c0_21, %c0_22] : memref<16x128xf32, #tpu.memory_space<vmem>>, vector<16x128xf32>
      %c0_23 = arith.constant 0 : index
      %c0_24 = arith.constant 0 : index
      %91 = vector.load %arg5[%c0_23, %c0_24] : memref<16x128xf32, #tpu.memory_space<vmem>>, vector<16x128xf32>
      tpu.vector_store %arg5[%c0_23, %c0_24], %90 {strides = array<i32>} : memref<16x128xf32, #tpu.memory_space<vmem>>, vector<16x128xf32>,
    } else {
    }
    return
  }
  func.func @transform_0(%arg0: i32, %arg1: i32) -> (i32, i32) {
    %c0_i32 = arith.constant 0 : i32
    %c0_i32_0 = arith.constant 0 : i32
    return %arg0, %c0_i32 : i32, i32
  }
  func.func @transform_1(%arg0: i32, %arg1: i32) -> (i32, i32) {
    %c0_i32 = arith.constant 0 : i32
    %c0_i32_0 = arith.constant 0 : i32
    return %arg0, %c0_i32 : i32, i32
  }
  func.func @transform_2(%arg0: i32, %arg1: i32) -> (i32, i32) {
    %c0_i32 = arith.constant 0 : i32
    %c0_i32_0 = arith.constant 0 : i32
    return %arg1, %c0_i32 : i32, i32
  }
  func.func @transform_3(%arg0: i32, %arg1: i32) -> (i32, i32) {
    %c0_i32 = arith.constant 0 : i32
    %c0_i32_0 = arith.constant 0 : i32
    return %arg0, %c0_i32 : i32, i32
  }
}

</mosaic_0001>

<llo_original>
// kernel: tpu_custom_call.1
$region0: #{tpu_custom_call.1}
  #allocation0 [shape = 'u32[]', space=smem, size = 0x4, offset = 0x4, fixed_abs, tag = 'smem constant byte address 0x4 - core index']
  #allocation1 [shape = 'u32[144,128]{1,0:T(1,128)}', space=vmem, size = 0x12000, scoped, tag = 'internal scratch']
  #allocation2 [shape = 'f32[16,128]{1,0:T(8,128)}', space=vmem, size = 0x2000, scoped, tag = 'scratch operand']
  %s0 = inlined_call_operand.vmem [shape: s32[16,8], index: 0, kind: input, shape index: {}]
  %s1 = inlined_call_operand.vmem [shape: f32[16,8], index: 1, kind: input, shape index: {}]
  %s2 = inlined_call_operand.hbm [shape: f32[64,128], index: 2, kind: input, shape index: {}]
  %s3 = inlined_call_operand.hbm [shape: f32[16,128], index: 3, kind: output, shape index: {}]
  %s4 = sld [smem:[#allocation0]]
  $region34: #{tpu_custom_call.1} parent=0
    _
  %s6 = ssub.s32 1, %s4
  %s7 = scalar_select 0, %s6, %s4
  $region1: #{tpu_custom_call.1} parent=0
    #allocation3 [shape = 'u8[32768]{0}', space=vmem, size = 0x8000, scoped, tag = 'input window, operand 2, single buffered']
    #allocation4 [shape = 's32[1]{0}', space=sflag, size = 0x4, scoped, tag = 'scoped memory for tpu_custom_call.1']
    #allocation5 [shape = 's32[1]{0}', space=sflag, size = 0x4, scoped, tag = 'scoped memory for tpu_custom_call.1']
    #allocation6 [shape = 'u8[8192]{0}', space=vmem, size = 0x2000, scoped, tag = 'output window, operand 0, single buffered']
    %8 = vsyncpa [#allocation4], 0
    %9 = vsyncpa [#allocation5], 0
    // Predicated region
    $region2: #{tpu_custom_call.1} parent=1 // pred_check
      _
    $region3: #{tpu_custom_call.1} parent=1 // pred_check_branch
      %11 = sbr.rel (0) target = $region5
    $region4: #{tpu_custom_call.1} parent=1 // pred_region
      _
    $region5: #{tpu_custom_call.1} parent=1 // pred_fallthru
      _
    // Predicated region
    $region6: #{tpu_custom_call.1} parent=1 // pred_check
      _
    $region7: #{tpu_custom_call.1} parent=1 // pred_check_branch
      %13 = sbr.rel (0) target = $region9
    $region8: #{tpu_custom_call.1} parent=1 // pred_region
      _
    $region9: #{tpu_custom_call.1} parent=1 // pred_fallthru
      _
    // Predicated region
    $region10: #{tpu_custom_call.1} parent=1 // pred_check
      _
    $region11: #{tpu_custom_call.1} parent=1 // pred_check_branch
      %15 = sbr.rel (0) target = $region13
    $region12: #{tpu_custom_call.1} parent=1 // pred_region
      %s17 = ssub.s32 1024, 1024
      %18 = vsyncadd [#allocation4], %s17
      %s19 = sshll.u32 [#allocation3], 4
      %s20 = int_to_ptr.vmem [resolvable:$true] %s19
      %25 = dma.hbm_to_vmem [thread:$0]  %s2, 1024, %s20, [#allocation4], 128, 128, 8
    $region13: #{tpu_custom_call.1} parent=1 // pred_fallthru
      _
    // Predicated region
    $region14: #{tpu_custom_call.1} parent=1 // pred_check
      _
    $region15: #{tpu_custom_call.1} parent=1 // pred_check_branch
      %27 = sbr.rel (0) target = $region17
    $region16: #{tpu_custom_call.1} parent=1 // pred_region
      %28 = dma.done [#allocation4], 1024
    $region17: #{tpu_custom_call.1} parent=1 // pred_fallthru
      _
    %p29 = scmp.eq.s32.totalorder 0, 0
    // Predicated region
    $region18: #{tpu_custom_call.1} parent=1 // pred_check
      %p30 = pneg %p29
    $region19: #{tpu_custom_call.1} parent=1 // pred_check_branch
      %32 = sbr.rel (%p30) target = $region21
    $region20: #{tpu_custom_call.1} parent=1 // pred_region
      %33 = vst [vmem:[#allocation2] sm:$0xff] 0.0
      %34 = vst [vmem:[#allocation2 + $0x8] sm:$0xff] 0.0
    $region21: #{tpu_custom_call.1} parent=1 // pred_fallthru
      _
    %v35 = vld [vmem:[%s0] sm:$0xff]
    %v36 = vld [vmem:[%s0 + $0x8] sm:$0xff]
    %v37 = vld [vmem:[%s1] sm:$0xff]
    %v38 = vld [vmem:[%s1 + $0x8] sm:$0xff]
    %v39 = vlaneseq
    %v40 = vand.u32 %v39, 127
    %s41 = smul.u32 0, 64
    %v42 = vstv %s41
    %v43 = vadd.s32 %v40, %v42
    %44 = vset.pattern.permute.xlu0 0
    %45 = vperm.xlu0 %44, %v35
    %v46 = vpop.permute.xlu0 %45
    %47 = vset.pattern.permute.xlu0 0
    %48 = vperm.xlu0 %47, %v36
    %v49 = vpop.permute.xlu0 %48
    %vm50 = vcmp.eq.s32.totalorder %v46, %v43
    %vm51 = vcmp.eq.s32.totalorder %v49, %v43
    %53 = vset.pattern.permute.xlu0 0
    %54 = vperm.xlu0 %53, %v37
    %v55 = vpop.permute.xlu0 %54
    %58 = vset.pattern.permute.xlu0 0
    %59 = vperm.xlu0 %58, %v38
    %v60 = vpop.permute.xlu0 %59
    %v62 = vsel %vm50, %v55, 0.0
    %v63 = vsel %vm51, %v60, 0.0
    %v64 = vadd.f32 %v62, 0.0
    %v65 = vadd.f32 %v63, 0.0
    %66 = vset.pattern.permute.xlu0 1
    %67 = vperm.xlu0 %66, %v35
    %v68 = vpop.permute.xlu0 %67
    %69 = vset.pattern.permute.xlu0 1
    %70 = vperm.xlu0 %69, %v36
    %v71 = vpop.permute.xlu0 %70
    %vm72 = vcmp.eq.s32.totalorder %v68, %v43
    %vm73 = vcmp.eq.s32.totalorder %v71, %v43
    %74 = vset.pattern.permute.xlu0 1
    %75 = vperm.xlu0 %74, %v37
    %v76 = vpop.permute.xlu0 %75
    %78 = vset.pattern.permute.xlu0 1
    %79 = vperm.xlu0 %78, %v38
    %v80 = vpop.permute.xlu0 %79
    %v82 = vsel %vm72, %v76, 0.0
    %v83 = vsel %vm73, %v80, 0.0
    %v84 = vadd.f32 %v64, %v82
    %v85 = vadd.f32 %v65, %v83
    %86 = vset.pattern.permute.xlu0 2
    %87 = vperm.xlu0 %86, %v35
    %v88 = vpop.permute.xlu0 %87
    %89 = vset.pattern.permute.xlu0 2
    %90 = vperm.xlu0 %89, %v36
    %v91 = vpop.permute.xlu0 %90
    %vm92 = vcmp.eq.s32.totalorder %v88, %v43
    %vm93 = vcmp.eq.s32.totalorder %v91, %v43
    %94 = vset.pattern.permute.xlu0 2
    %95 = vperm.xlu0 %94, %v37
    %v96 = vpop.permute.xlu0 %95
    %98 = vset.pattern.permute.xlu0 2
    %99 = vperm.xlu0 %98, %v38
    %v100 = vpop.permute.xlu0 %99
    %v102 = vsel %vm92, %v96, 0.0
    %v103 = vsel %vm93, %v100, 0.0
    %v104 = vadd.f32 %v84, %v102
    %v105 = vadd.f32 %v85, %v103
    %106 = vset.pattern.permute.xlu0 3
    %107 = vperm.xlu0 %106, %v35
    %v108 = vpop.permute.xlu0 %107
    %109 = vset.pattern.permute.xlu0 3
    %110 = vperm.xlu0 %109, %v36
    %v111 = vpop.permute.xlu0 %110
    %vm112 = vcmp.eq.s32.totalorder %v108, %v43
    %vm113 = vcmp.eq.s32.totalorder %v111, %v43
    %114 = vset.pattern.permute.xlu0 3
    %115 = vperm.xlu0 %114, %v37
    %v116 = vpop.permute.xlu0 %115
    %118 = vset.pattern.permute.xlu0 3
    %119 = vperm.xlu0 %118, %v38
    %v120 = vpop.permute.xlu0 %119
    %v122 = vsel %vm112, %v116, 0.0
    %v123 = vsel %vm113, %v120, 0.0
    %v124 = vadd.f32 %v104, %v122
    %v125 = vadd.f32 %v105, %v123
    %126 = vset.pattern.permute.xlu0 4
    %127 = vperm.xlu0 %126, %v35
    %v128 = vpop.permute.xlu0 %127
    %129 = vset.pattern.permute.xlu0 4
    %130 = vperm.xlu0 %129, %v36
    %v131 = vpop.permute.xlu0 %130
    %vm132 = vcmp.eq.s32.totalorder %v128, %v43
    %vm133 = vcmp.eq.s32.totalorder %v131, %v43
    %134 = vset.pattern.permute.xlu0 4
    %135 = vperm.xlu0 %134, %v37
    %v136 = vpop.permute.xlu0 %135
    %138 = vset.pattern.permute.xlu0 4
    %139 = vperm.xlu0 %138, %v38
    %v140 = vpop.permute.xlu0 %139
    %v142 = vsel %vm132, %v136, 0.0
    %v143 = vsel %vm133, %v140, 0.0
    %v144 = vadd.f32 %v124, %v142
    %v145 = vadd.f32 %v125, %v143
    %146 = vset.pattern.permute.xlu0 5
    %147 = vperm.xlu0 %146, %v35
    %v148 = vpop.permute.xlu0 %147
    %149 = vset.pattern.permute.xlu0 5
    %150 = vperm.xlu0 %149, %v36
    %v151 = vpop.permute.xlu0 %150
    %vm152 = vcmp.eq.s32.totalorder %v148, %v43
    %vm153 = vcmp.eq.s32.totalorder %v151, %v43
    %154 = vset.pattern.permute.xlu0 5
    %155 = vperm.xlu0 %154, %v37
    %v156 = vpop.permute.xlu0 %155
    %158 = vset.pattern.permute.xlu0 5
    %159 = vperm.xlu0 %158, %v38
    %v160 = vpop.permute.xlu0 %159
    %v162 = vsel %vm152, %v156, 0.0
    %v163 = vsel %vm153, %v160, 0.0
    %v164 = vadd.f32 %v144, %v162
    %v165 = vadd.f32 %v145, %v163
    %166 = vset.pattern.permute.xlu0 6
    %167 = vperm.xlu0 %166, %v35
    %v168 = vpop.permute.xlu0 %167
    %169 = vset.pattern.permute.xlu0 6
    %170 = vperm.xlu0 %169, %v36
    %v171 = vpop.permute.xlu0 %170
    %vm172 = vcmp.eq.s32.totalorder %v168, %v43
    %vm173 = vcmp.eq.s32.totalorder %v171, %v43
    %174 = vset.pattern.permute.xlu0 6
    %175 = vperm.xlu0 %174, %v37
    %v176 = vpop.permute.xlu0 %175
    %178 = vset.pattern.permute.xlu0 6
    %179 = vperm.xlu0 %178, %v38
    %v180 = vpop.permute.xlu0 %179
    %v182 = vsel %vm172, %v176, 0.0
    %v183 = vsel %vm173, %v180, 0.0
    %v184 = vadd.f32 %v164, %v182
    %v185 = vadd.f32 %v165, %v183
    %186 = vset.pattern.permute.xlu0 7
    %187 = vperm.xlu0 %186, %v35
    %v188 = vpop.permute.xlu0 %187
    %189 = vset.pattern.permute.xlu0 7
    %190 = vperm.xlu0 %189, %v36
    %v191 = vpop.permute.xlu0 %190
    %vm192 = vcmp.eq.s32.totalorder %v188, %v43
    %vm193 = vcmp.eq.s32.totalorder %v191, %v43
    %194 = vset.pattern.permute.xlu0 7
    %195 = vperm.xlu0 %194, %v37
    %v196 = vpop.permute.xlu0 %195
    %198 = vset.pattern.permute.xlu0 7
    %199 = vperm.xlu0 %198, %v38
    %v200 = vpop.permute.xlu0 %199
    %v202 = vsel %vm192, %v196, 0.0
    %v203 = vsel %vm193, %v200, 0.0
    %v204 = vadd.f32 %v184, %v202
    %v205 = vadd.f32 %v185, %v203
    %v206 = vld [vmem:[#allocation2] sm:$0xff]
    %v207 = vld [vmem:[#allocation2 + $0x8] sm:$0xff]
    %v208 = vld [vmem:[#allocation3] sm:$0xff]
    %v209 = vld [vmem:[#allocation3 + $0x8] sm:$0xff]
    %v210 = vld [vmem:[#allocation3 + $0x10] sm:$0xff]
    %v211 = vld [vmem:[#allocation3 + $0x18] sm:$0xff]
    %v212 = vld [vmem:[#allocation3 + $0x20] sm:$0xff]
    %v213 = vld [vmem:[#allocation3 + $0x28] sm:$0xff]
    %v214 = vld [vmem:[#allocation3 + $0x30] sm:$0xff]
    %v215 = vld [vmem:[#allocation3 + $0x38] sm:$0xff]
    %vm216 = vcmask 523264
    %v218 = vsel %vm216, %v204, 0
    %v221 = vsel %vm216, %v205, 0
    %223 = vmatprep.subr.mxu0 0.0
    %224 = vmatpush1.msra.mxu0 %v208
    %225 = vmatprep.subr.mxu0 0.0
    %226 = vmatpush1.msra.mxu0 %v209
    %227 = vmatprep.subr.mxu0 0.0
    %228 = vmatpush1.msra.mxu0 %v210
    %229 = vmatprep.subr.mxu0 0.0
    %230 = vmatpush1.msra.mxu0 %v211
    %231 = vmatprep.subr.mxu0 0.0
    %232 = vmatpush1.msra.mxu0 %v212
    %233 = vmatprep.subr.mxu0 0.0
    %234 = vmatpush1.msra.mxu0 %v213
    %235 = vmatprep.subr.mxu0 0.0
    %236 = vmatpush1.msra.mxu0 %v214
    %237 = vmatprep.subr.mxu0 0.0
    %238 = vmatpush1.msra.mxu0 %v215
    %239 = vmatprep.subr.mxu0 0.0
    %240 = vmatpush1.msra.mxu0 0.0
    %241 = vmatprep.subr.mxu0 0.0
    %242 = vmatpush1.msra.mxu0 0.0
    %243 = vmatprep.subr.mxu0 0.0
    %244 = vmatpush1.msra.mxu0 0.0
    %245 = vmatprep.subr.mxu0 0.0
    %246 = vmatpush1.msra.mxu0 0.0
    %247 = vmatprep.subr.mxu0 0.0
    %248 = vmatpush1.msra.mxu0 0.0
    %249 = vmatprep.subr.mxu0 0.0
    %250 = vmatpush1.msra.mxu0 0.0
    %251 = vmatprep.subr.mxu0 0.0
    %252 = vmatpush1.msra.mxu0 0.0
    %253 = vmatprep.subr.mxu0 0.0
    %254 = vmatpush1.msra.mxu0 0.0
    %255 = vmatprep.subr.mxu0 0.0
    %256 = vmatpush1.msra.mxu0 0.0
    %257 = vmatprep.subr.mxu0 0.0
    %258 = vmatpush1.msra.mxu0 0.0
    %259 = vmatprep.subr.mxu0 0.0
    %260 = vmatpush1.msra.mxu0 0.0
    %261 = vmatprep.subr.mxu0 0.0
    %262 = vmatpush1.msra.mxu0 0.0
    %263 = vmatprep.subr.mxu0 0.0
    %264 = vmatpush1.msra.mxu0 0.0
    %265 = vmatprep.subr.mxu0 0.0
    %266 = vmatpush1.msra.mxu0 0.0
    %267 = vmatprep.subr.mxu0 0.0
    %268 = vmatpush1.msra.mxu0 0.0
    %269 = vmatprep.subr.mxu0 0.0
    %270 = vmatpush1.msra.mxu0 0.0
    %271 = vmatprep.subr.mxu0 0.0
    %272 = vmatpush1.msra.mxu0 0.0
    %273 = vmatprep.subr.mxu0 0.0
    %274 = vmatpush1.msra.mxu0 0.0
    %275 = vmatprep.subr.mxu0 0.0
    %276 = vmatpush1.msra.mxu0 0.0
    %277 = vmatprep.subr.mxu0 0.0
    %278 = vmatpush1.msra.mxu0 0.0
    %279 = vmatprep.subr.mxu0 0.0
    %280 = vmatpush1.msra.mxu0 0.0
    %281 = vmatprep.subr.mxu0 0.0
    %282 = vmatpush1.msra.mxu0 0.0
    %283 = vmatprep.subr.mxu0 0.0
    %284 = vmatpush1.msra.mxu0 0.0
    %285 = vmatprep.subr.mxu0 0.0
    %286 = vmatpush1.msra.mxu0 0.0
    %287 = vmatprep.mubr.f32.mxu0 0.0
    %288 = vmatmul.mubr.f32.gmra.mrb[0].mxu0 %v218
    %v289 = vpop.f32.mrb[0].mxu0
    %v290 = vadd.f32 0.0, %v289
    %v291 = vpop.f32.mrb[0].mxu0
    %292 = vmatprep.mubr.f32.mxu0 0.0
    %293 = vmatmul.mubr.f32.gmra.mrb[0].mxu0 %v221
    %v294 = vpop.f32.mrb[0].mxu0
    %v295 = vadd.f32 0.0, %v294
    %v296 = vpop.f32.mrb[0].mxu0
    %297 = vdwg.mxu0
    %v298 = vadd.f32 %v206, %v290
    %v299 = vadd.f32 %v207, %v295
    %300 = vst [vmem:[#allocation2] sm:$0xff] %v298
    %301 = vst [vmem:[#allocation2 + $0x8] sm:$0xff] %v299
    // Predicated region
    $region22: #{tpu_custom_call.1} parent=1 // pred_check
      %p302 = pneg %p29
    $region23: #{tpu_custom_call.1} parent=1 // pred_check_branch
      %304 = sbr.rel (%p302) target = $region25
    $region24: #{tpu_custom_call.1} parent=1 // pred_region
      %v305 = vld [vmem:[#allocation2] sm:$0xff]
      %v306 = vld [vmem:[#allocation2 + $0x8] sm:$0xff]
      %307 = vst [vmem:[#allocation6] sm:$0xff] %v305
      %308 = vst [vmem:[#allocation6 + $0x8] sm:$0xff] %v306
    $region25: #{tpu_custom_call.1} parent=1 // pred_fallthru
      _
    // Predicated region
    $region26: #{tpu_custom_call.1} parent=1 // pred_check
      _
    $region27: #{tpu_custom_call.1} parent=1 // pred_check_branch
      %310 = sbr.rel (0) target = $region29
    $region28: #{tpu_custom_call.1} parent=1 // pred_region
      %s312 = ssub.s32 256, 256
      %313 = vsyncadd [#allocation5], %s312
      %s314 = sshll.u32 [#allocation6], 4
      %s315 = int_to_ptr.vmem [resolvable:$true] %s314
      %320 = dma.vmem_to_hbm [thread:$0]  %s315, 256, %s3, [#allocation5], 128, 128, 8
    $region29: #{tpu_custom_call.1} parent=1 // pred_fallthru
      _
    // Predicated region
    $region30: #{tpu_custom_call.1} parent=1 // pred_check
      _
    $region31: #{tpu_custom_call.1} parent=1 // pred_check_branch
      %322 = sbr.rel (0) target = $region33
    $region32: #{tpu_custom_call.1} parent=1 // pred_region
      %323 = dma.done [#allocation5], 256
    $region33: #{tpu_custom_call.1} parent=1 // pred_fallthru
      _
    %324 = vsyncpa [#allocation4], 1
    %325 = vsyncpa [#allocation5], 1

</llo_original>
